<compile_context>
chip_gen: v5e
topology: v5e:2x2
jax: 0.10.0
libtpu: 0.0.40
codegen_flags: <defaults>
</compile_context>

<pallas_src>
import math

import jax
import jax.numpy as jnp
from jax.experimental import pallas as pl
from jax.experimental.pallas import tpu as pltpu

_LANES = 128


def _round_up(x, m):
    return (x + m - 1) // m * m


def _gelu_tanh(x):
    # tanh-approx GELU; tanh is EUP-native on TPU (erf is not).
    c = 0.7978845608028654  # sqrt(2/pi)
    return 0.5 * x * (1.0 + jnp.tanh(c * (x + 0.044715 * (x * x * x))))


# ------------------------------------------------------------------ kernel ---

def _mlp_kernel(x_ref,                 # (TB, 64)   bf16 activations
                w1_ref, b1_ref,        # (64, 384)  bf16 folded, (1, 384) f32
                w2_ref, b2_ref,        # (384, 256) bf16 folded+padded, (1, 256) f32
                w3_ref, b3_ref,        # (256, 256) bf16 padded, (1, 256) f32
                o_ref):                # (TB, 256)  bf16 logits (padded cols = 0)
    x = x_ref[...]

    # fc1 (input_bn + bn1 folded in) -> gelu (bf16 elementwise)
    h = jnp.dot(x, w1_ref[...], preferred_element_type=jnp.float32) + b1_ref[...]
    h = _gelu_tanh(h.astype(jnp.bfloat16))
    # dropout: identity (eval mode)

    # fc2 (bn2 folded in, output zero-padded to 256) -> gelu (bf16 elementwise)
    h = jnp.dot(h, w2_ref[...], preferred_element_type=jnp.float32) + b2_ref[...]
    h = _gelu_tanh(h.astype(jnp.bfloat16))
    # dropout: identity (eval mode)

    # out (lane-dense, padded to 256 columns); bf16 store halves HBM writeback.
    o = jnp.dot(h, w3_ref[...], preferred_element_type=jnp.float32) + b3_ref[...]
    o_ref[...] = o.astype(o_ref.dtype)


def embedding_model_forward(idx, kp, *, block_rows=1024):
    """idx: (B, 1) int32 token ids.  kp: folded kernel params (fold_params()).
    Returns logits (B, n_class) bfloat16."""
    # Glue: embedding gather + squeeze(1), like self.embedding(x).squeeze(1).
    x = jnp.take(kp["emb_weight"], idx[:, 0], axis=0)          # (B, 64) bf16

    B, D = x.shape
    n_class = kp["n_class"]
    n_pad = kp["b3"].shape[1]                                  # 256

    # Keep >= ~4 grid steps for large B (v7x megacore sharding + pipelining),
    # tb a multiple of 8 (sublane tiling).  No jnp.pad: Pallas masks the
    # ragged last block; rows are independent so that is safe.
    tb = min(block_rows, max(8, _round_up(pl.cdiv(B, 4), 8)))
    grid = (pl.cdiv(B, tb),)

    def resident(arr):
        # Whole (small) weight/bias stays VMEM-resident across grid steps.
        return pl.BlockSpec(arr.shape, lambda i: (0, 0))

    out = pl.pallas_call(
        _mlp_kernel,
        out_shape=jax.ShapeDtypeStruct((B, n_pad), jnp.bfloat16),
        grid=grid,
        in_specs=[
            pl.BlockSpec((tb, D), lambda i: (i, 0)),           # activations
            resident(kp["w1"]), resident(kp["b1"]),
            resident(kp["w2"]), resident(kp["b2"]),
            resident(kp["w3"]), resident(kp["b3"]),
        ],
        out_specs=pl.BlockSpec((tb, n_pad), lambda i: (i, 0)),
        compiler_params=pltpu.CompilerParams(
            dimension_semantics=("parallel",)),
    )(x, kp["w1"], kp["b1"], kp["w2"], kp["b2"], kp["w3"], kp["b3"])

    # Consumers that tolerate the padded (B, 256) bf16 block can use `out`
    # directly; slice here to match the module's (B, n_class) contract.
    return out[:, :n_class]


# ------------------------------------------------------- parameter creation ---

def _kaiming_normal(key, shape, fan_in):
    # nn.init.kaiming_normal_ default: gain = sqrt(2), std = gain / sqrt(fan_in)
    std = math.sqrt(2.0 / fan_in)
    return std * jax.random.normal(key, shape, dtype=jnp.float32)


def make_params(key, vocab_size, embedding_dim=64, n_class=173, eps=1e-5):
    """Raw f32 parameters matching the PyTorch module (eval-mode BN buffers)."""
    k_emb, k1, k2, k3 = jax.random.split(key, 4)

    emb_weight = _kaiming_normal(k_emb, (vocab_size, embedding_dim),
                                 fan_in=embedding_dim)

    # PyTorch Linear weight is (out, in); store the transpose (in, out).
    w1 = _kaiming_normal(k1, (384, embedding_dim), embedding_dim).T
    w2 = _kaiming_normal(k2, (192, 384), 384).T
    w3 = _kaiming_normal(k3, (n_class, 192), 192).T
    b1 = jnp.zeros((384,), jnp.float32)
    b2 = jnp.zeros((192,), jnp.float32)
    b3 = jnp.zeros((n_class,), jnp.float32)

    def bn(dim):
        return dict(gamma=jnp.ones((dim,), jnp.float32),
                    beta=jnp.zeros((dim,), jnp.float32),
                    mean=jnp.zeros((dim,), jnp.float32),
                    var=jnp.ones((dim,), jnp.float32))

    return dict(emb_weight=emb_weight,
                w1=jnp.asarray(w1), b1=b1,
                w2=jnp.asarray(w2), b2=b2,
                w3=jnp.asarray(w3), b3=b3,
                bn0=bn(embedding_dim), bn1=bn(384), bn2=bn(192),
                eps=eps, n_class=n_class)


def _bn_scale_shift(bn, eps):
    scale = bn["gamma"] / jnp.sqrt(bn["var"] + eps)
    shift = bn["beta"] - bn["mean"] * scale
    return scale, shift


def fold_params(raw):
    """Fold eval-mode BNs + biases into the Linear weights (numerically exact
    in f32), cast matmul weights + embedding table to bf16, zero-pad the
    hidden-192 and output dims to lane-dense multiples of 128."""
    eps, n_class = raw["eps"], raw["n_class"]
    s0, t0 = _bn_scale_shift(raw["bn0"], eps)
    s1, t1 = _bn_scale_shift(raw["bn1"], eps)
    s2, t2 = _bn_scale_shift(raw["bn2"], eps)

    # bn1(fc1(input_bn(x))) = x @ W1' + b1'
    w1f = (s0[:, None] * raw["w1"]) * s1[None, :]
    b1f = (t0 @ raw["w1"] + raw["b1"]) * s1 + t1
    # bn2(fc2(g)) = g @ W2' + b2'
    w2f = raw["w2"] * s2[None, :]
    b2f = raw["b2"] * s2 + t2

    # Pad hidden 192 -> 256 (zero output cols of fc2, zero input rows of fc3);
    # padded activations are GELU(0) = 0 and contribute nothing.
    h_in, h_out = raw["w2"].shape                       # (384, 192)
    h_pad = _round_up(h_out, _LANES)                    # 256
    w2p = jnp.zeros((h_in, h_pad), jnp.float32).at[:, :h_out].set(w2f)
    b2p = jnp.zeros((h_pad,), jnp.float32).at[:h_out].set(b2f)

    # Pad output n_class -> 256 so the final store is lane-dense.
    n_pad = _round_up(n_class, _LANES)
    w3p = jnp.zeros((h_pad, n_pad), jnp.float32)
    w3p = w3p.at[:h_out, :n_class].set(raw["w3"])
    b3p = jnp.zeros((n_pad,), jnp.float32).at[:n_class].set(raw["b3"])

    return dict(
        emb_weight=raw["emb_weight"].astype(jnp.bfloat16),
        w1=w1f.astype(jnp.bfloat16), b1=b1f.reshape(1, -1),
        w2=w2p.astype(jnp.bfloat16), b2=b2p.reshape(1, -1),
        w3=w3p.astype(jnp.bfloat16), b3=b3p.reshape(1, -1),
        n_class=n_class,
    )


# ------------------------------------------------------- reference (pure JAX) -

def _gelu_exact(x):
    # PyTorch F.gelu default (exact, erf-based) — reference only.
    return 0.5 * x * (1.0 + jax.lax.erf(x * (1.0 / math.sqrt(2.0))))


def reference_forward(idx, raw):
    """Pure-JAX f32 reference with the original (unfolded) eval-mode semantics."""
    eps = raw["eps"]
    s0, t0 = _bn_scale_shift(raw["bn0"], eps)
    s1, t1 = _bn_scale_shift(raw["bn1"], eps)
    s2, t2 = _bn_scale_shift(raw["bn2"], eps)
    x = jnp.take(raw["emb_weight"], idx[:, 0], axis=0)
    x = x * s0 + t0
    x = _gelu_exact((x @ raw["w1"] + raw["b1"]) * s1 + t1)
    x = _gelu_exact((x @ raw["w2"] + raw["b2"]) * s2 + t2)
    return x @ raw["w3"] + raw["b3"]


# -------------------------------------------------------------------- main ----

if __name__ == "__main__":
    vocab_size = 1000
    embedding_dim = 64
    n_class = 173
    batch = 8

    key = jax.random.PRNGKey(0)
    k_params, k_idx = jax.random.split(key)

    raw = make_params(k_params, vocab_size, embedding_dim, n_class)
    kp = fold_params(raw)

    # Input like the PyTorch model expects: (B, 1) integer token ids.
    idx = jax.random.randint(k_idx, (batch, 1), 0, vocab_size, dtype=jnp.int32)

    out = embedding_model_forward(idx, kp)
    out = jax.block_until_ready(out)

    ref = reference_forward(idx, raw)
    assert out.shape == (batch, n_class), out.shape
    # bf16 weights/activations/logits + tanh-GELU vs. the exact f32 erf
    # reference -> compare with a correspondingly loosened tolerance.
    out_f32 = out.astype(jnp.float32)
    max_err = float(jnp.max(jnp.abs(out_f32 - ref)))
    assert jnp.allclose(out_f32, ref, atol=3e-2, rtol=3e-2), max_err

    print("KERNEL_OK")
</pallas_src>

<mosaic_0001>
module attributes {stable_mosaic.version = 11 : i64} {
  func.func @_mlp_kernel(%arg0: i32, %arg1: memref<8x64xbf16, #tpu.memory_space<vmem>>, %arg2: memref<64x384xbf16, #tpu.memory_space<vmem>>, %arg3: memref<1x384xf32, #tpu.memory_space<vmem>>, %arg4: memref<384x256xbf16, #tpu.memory_space<vmem>>, %arg5: memref<1x256xf32, #tpu.memory_space<vmem>>, %arg6: memref<256x256xbf16, #tpu.memory_space<vmem>>, %arg7: memref<1x256xf32, #tpu.memory_space<vmem>>, %arg8: memref<8x256xbf16, #tpu.memory_space<vmem>>) attributes {dimension_semantics = [#tpu.dimension_semantics<parallel>], iteration_bounds = array<i64: 1>, scalar_prefetch = 0 : i64, scratch_operands = 0 : i64, tpu.core_type = #tpu.core_type<tc>, window_params = [{transform_indices = @transform_0, window_bounds = array<i64: 8, 64>}, {pipeline_mode = #tpu.pipeline_mode<synchronous>, transform_indices = @transform_1, window_bounds = array<i64: 64, 384>}, {pipeline_mode = #tpu.pipeline_mode<synchronous>, transform_indices = @transform_2, window_bounds = array<i64: 1, 384>}, {pipeline_mode = #tpu.pipeline_mode<synchronous>, transform_indices = @transform_3, window_bounds = array<i64: 384, 256>}, {pipeline_mode = #tpu.pipeline_mode<synchronous>, transform_indices = @transform_4, window_bounds = array<i64: 1, 256>}, {pipeline_mode = #tpu.pipeline_mode<synchronous>, transform_indices = @transform_5, window_bounds = array<i64: 256, 256>}, {pipeline_mode = #tpu.pipeline_mode<synchronous>, transform_indices = @transform_6, window_bounds = array<i64: 1, 256>}, {transform_indices = @transform_7, window_bounds = array<i64: 8, 256>}]} {
    %c0 = arith.constant 0 : index
    %c0_0 = arith.constant 0 : index
    %0 = vector.load %arg1[%c0, %c0_0] : memref<8x64xbf16, #tpu.memory_space<vmem>>, vector<8x64xbf16>
    %c0_1 = arith.constant 0 : index
    %c0_2 = arith.constant 0 : index
    %1 = vector.load %arg2[%c0_1, %c0_2] : memref<64x384xbf16, #tpu.memory_space<vmem>>, vector<64x384xbf16>
    %cst = arith.constant dense<0.000000e+00> : vector<8x384xf32>
    %2 = tpu.matmul %0, %1, %cst {dimension_numbers = #tpu.dot_dimension_numbers<[1], [0], [0], [1], [0, 0, 1, 1], [], []>} : vector<8x64xbf16>, vector<64x384xbf16>, vector<8x384xf32> -> vector<8x384xf32>
    %c0_3 = arith.constant 0 : index
    %c0_4 = arith.constant 0 : index
    %3 = vector.load %arg3[%c0_3, %c0_4] : memref<1x384xf32, #tpu.memory_space<vmem>>, vector<1x384xf32>
    %4 = vector.broadcast %3 : vector<1x384xf32> to vector<8x384xf32>
    %5 = arith.addf %2, %4 : vector<8x384xf32>
    %6 = arith.truncf %5 : vector<8x384xf32> to vector<8x384xbf16>
    %cst_5 = arith.constant 5.000000e-01 : bf16
    %7 = vector.broadcast %cst_5 : bf16 to vector<8x384xbf16>
    %8 = arith.mulf %7, %6 : vector<8x384xbf16>
    %9 = arith.mulf %6, %6 : vector<8x384xbf16>
    %10 = arith.mulf %9, %6 : vector<8x384xbf16>
    %cst_6 = arith.constant 4.467770e-02 : bf16
    %11 = vector.broadcast %cst_6 : bf16 to vector<8x384xbf16>
    %12 = arith.mulf %11, %10 : vector<8x384xbf16>
    %13 = arith.addf %6, %12 : vector<8x384xbf16>
    %cst_7 = arith.constant 7.968750e-01 : bf16
    %14 = vector.broadcast %cst_7 : bf16 to vector<8x384xbf16>
    %15 = arith.mulf %14, %13 : vector<8x384xbf16>
    %16 = math.tanh %15 : vector<8x384xbf16>
    %cst_8 = arith.constant 1.000000e+00 : bf16
    %17 = vector.broadcast %cst_8 : bf16 to vector<8x384xbf16>
    %18 = arith.addf %17, %16 : vector<8x384xbf16>
    %19 = arith.mulf %8, %18 : vector<8x384xbf16>
    %c0_9 = arith.constant 0 : index
    %c0_10 = arith.constant 0 : index
    %20 = vector.load %arg4[%c0_9, %c0_10] : memref<384x256xbf16, #tpu.memory_space<vmem>>, vector<384x256xbf16>
    %cst_11 = arith.constant dense<0.000000e+00> : vector<8x256xf32>
    %21 = tpu.matmul %19, %20, %cst_11 {dimension_numbers = #tpu.dot_dimension_numbers<[1], [0], [0], [1], [0, 0, 1, 1], [], []>} : vector<8x384xbf16>, vector<384x256xbf16>, vector<8x256xf32> -> vector<8x256xf32>
    %c0_12 = arith.constant 0 : index
    %c0_13 = arith.constant 0 : index
    %22 = vector.load %arg5[%c0_12, %c0_13] : memref<1x256xf32, #tpu.memory_space<vmem>>, vector<1x256xf32>
    %23 = vector.broadcast %22 : vector<1x256xf32> to vector<8x256xf32>
    %24 = arith.addf %21, %23 : vector<8x256xf32>
    %25 = arith.truncf %24 : vector<8x256xf32> to vector<8x256xbf16>
    %cst_14 = arith.constant 5.000000e-01 : bf16
    %26 = vector.broadcast %cst_14 : bf16 to vector<8x256xbf16>
    %27 = arith.mulf %26, %25 : vector<8x256xbf16>
    %28 = arith.mulf %25, %25 : vector<8x256xbf16>
    %29 = arith.mulf %28, %25 : vector<8x256xbf16>
    %cst_15 = arith.constant 4.467770e-02 : bf16
    %30 = vector.broadcast %cst_15 : bf16 to vector<8x256xbf16>
    %31 = arith.mulf %30, %29 : vector<8x256xbf16>
    %32 = arith.addf %25, %31 : vector<8x256xbf16>
    %cst_16 = arith.constant 7.968750e-01 : bf16
    %33 = vector.broadcast %cst_16 : bf16 to vector<8x256xbf16>
    %34 = arith.mulf %33, %32 : vector<8x256xbf16>
    %35 = math.tanh %34 : vector<8x256xbf16>
    %cst_17 = arith.constant 1.000000e+00 : bf16
    %36 = vector.broadcast %cst_17 : bf16 to vector<8x256xbf16>
    %37 = arith.addf %36, %35 : vector<8x256xbf16>
    %38 = arith.mulf %27, %37 : vector<8x256xbf16>
    %c0_18 = arith.constant 0 : index
    %c0_19 = arith.constant 0 : index
    %39 = vector.load %arg6[%c0_18, %c0_19] : memref<256x256xbf16, #tpu.memory_space<vmem>>, vector<256x256xbf16>
    %cst_20 = arith.constant dense<0.000000e+00> : vector<8x256xf32>
    %40 = tpu.matmul %38, %39, %cst_20 {dimension_numbers = #tpu.dot_dimension_numbers<[1], [0], [0], [1], [0, 0, 1, 1], [], []>} : vector<8x256xbf16>, vector<256x256xbf16>, vector<8x256xf32> -> vector<8x256xf32>
    %c0_21 = arith.constant 0 : index
    %c0_22 = arith.constant 0 : index
    %41 = vector.load %arg7[%c0_21, %c0_22] : memref<1x256xf32, #tpu.memory_space<vmem>>, vector<1x256xf32>
    %42 = vector.broadcast %41 : vector<1x256xf32> to vector<8x256xf32>
    %43 = arith.addf %40, %42 : vector<8x256xf32>
    %44 = arith.truncf %43 : vector<8x256xf32> to vector<8x256xbf16>
    %c0_23 = arith.constant 0 : index
    %c0_24 = arith.constant 0 : index
    %45 = vector.load %arg8[%c0_23, %c0_24] : memref<8x256xbf16, #tpu.memory_space<vmem>>, vector<8x256xbf16>
    tpu.vector_store %arg8[%c0_23, %c0_24], %44 {strides = array<i32>} : memref<8x256xbf16, #tpu.memory_space<vmem>>, vector<8x256xbf16>,
    return
  }
  func.func @transform_0(%arg0: i32) -> (i32, i32) {
    %c0_i32 = arith.constant 0 : i32
    %c0_i32_0 = arith.constant 0 : i32
    return %arg0, %c0_i32 : i32, i32
  }
  func.func @transform_1(%arg0: i32) -> (i32, i32) {
    %c0_i32 = arith.constant 0 : i32
    %c0_i32_0 = arith.constant 0 : i32
    %c0_i32_1 = arith.constant 0 : i32
    return %c0_i32, %c0_i32_0 : i32, i32
  }
  func.func @transform_2(%arg0: i32) -> (i32, i32) {
    %c0_i32 = arith.constant 0 : i32
    %c0_i32_0 = arith.constant 0 : i32
    %c0_i32_1 = arith.constant 0 : i32
    return %c0_i32, %c0_i32_0 : i32, i32
  }
  func.func @transform_3(%arg0: i32) -> (i32, i32) {
    %c0_i32 = arith.constant 0 : i32
    %c0_i32_0 = arith.constant 0 : i32
    %c0_i32_1 = arith.constant 0 : i32
    return %c0_i32, %c0_i32_0 : i32, i32
  }
  func.func @transform_4(%arg0: i32) -> (i32, i32) {
    %c0_i32 = arith.constant 0 : i32
    %c0_i32_0 = arith.constant 0 : i32
    %c0_i32_1 = arith.constant 0 : i32
    return %c0_i32, %c0_i32_0 : i32, i32
  }
  func.func @transform_5(%arg0: i32) -> (i32, i32) {
    %c0_i32 = arith.constant 0 : i32
    %c0_i32_0 = arith.constant 0 : i32
    %c0_i32_1 = arith.constant 0 : i32
    return %c0_i32, %c0_i32_0 : i32, i32
  }
  func.func @transform_6(%arg0: i32) -> (i32, i32) {
    %c0_i32 = arith.constant 0 : i32
    %c0_i32_0 = arith.constant 0 : i32
    %c0_i32_1 = arith.constant 0 : i32
    return %c0_i32, %c0_i32_0 : i32, i32
  }
  func.func @transform_7(%arg0: i32) -> (i32, i32) {
    %c0_i32 = arith.constant 0 : i32
    %c0_i32_0 = arith.constant 0 : i32
    return %arg0, %c0_i32 : i32, i32
  }
}

</mosaic_0001>

<llo_original>
// kernel: tpu_custom_call.1
$region0: #{tpu_custom_call.1}
  #allocation0 [shape = 'u32[]', space=smem, size = 0x4, offset = 0x4, fixed_abs, tag = 'smem constant byte address 0x4 - core index']
  #allocation1 [shape = 'u32[72,128]{1,0:T(1,128)}', space=vmem, size = 0x9000, scoped, tag = 'internal scratch']
  %s0 = inlined_call_operand.hbm [shape: bf16[8,64], index: 0, kind: input, shape index: {}]
  %s1 = inlined_call_operand.hbm [shape: bf16[64,384], index: 1, kind: input, shape index: {}]
  %s2 = inlined_call_operand.hbm [shape: f32[1,384], index: 2, kind: input, shape index: {}]
  %s3 = inlined_call_operand.hbm [shape: bf16[384,256], index: 3, kind: input, shape index: {}]
  %s4 = inlined_call_operand.vmem [shape: f32[1,256], index: 4, kind: input, shape index: {}]
  %s5 = inlined_call_operand.hbm [shape: bf16[256,256], index: 5, kind: input, shape index: {}]
  %s6 = inlined_call_operand.vmem [shape: f32[1,256], index: 6, kind: input, shape index: {}]
  %s7 = inlined_call_operand.hbm [shape: bf16[8,256], index: 7, kind: output, shape index: {}]
  %s8 = sld [smem:[#allocation0]]
  $region58: #{tpu_custom_call.1} parent=0
    _
  %s10 = ssub.s32 1, %s8
  %s11 = scalar_select 0, %s10, %s8
  $region1: #{tpu_custom_call.1} parent=0
    #allocation2 [shape = 'u8[2048]{0}', space=vmem, size = 0x800, scoped, tag = 'input window, operand 0, single buffered']
    #allocation3 [shape = 's32[1]{0}', space=sflag, size = 0x4, scoped, tag = 'scoped memory for tpu_custom_call.1']
    #allocation4 [shape = 's32[1]{0}', space=sflag, size = 0x4, scoped, tag = 'scoped memory for tpu_custom_call.1']
    #allocation5 [shape = 'u8[49152]{0}', space=vmem, size = 0xc000, scoped, tag = 'input window, operand 1, single buffered']
    #allocation6 [shape = 's32[1]{0}', space=sflag, size = 0x4, scoped, tag = 'scoped memory for tpu_custom_call.1']
    #allocation7 [shape = 'u8[1536]{0}', space=vmem, size = 0x800, scoped, tag = 'input window, operand 2, single buffered']
    #allocation8 [shape = 'u8[196608]{0}', space=vmem, size = 0x30000, scoped, tag = 'input window, operand 3, single buffered']
    #allocation9 [shape = 's32[1]{0}', space=sflag, size = 0x4, scoped, tag = 'scoped memory for tpu_custom_call.1']
    #allocation10 [shape = 'u8[131072]{0}', space=vmem, size = 0x20000, scoped, tag = 'input window, operand 5, single buffered']
    #allocation11 [shape = 'u8[4096]{0}', space=vmem, size = 0x1000, scoped, tag = 'output window, operand 0, single buffered']
    %12 = vsyncpa [#allocation3], 0
    %13 = vsyncpa [#allocation6], 0
    %14 = vsyncpa [#allocation9], 0
    %15 = vsyncpa [#allocation4], 0
    // Predicated region
    $region2: #{tpu_custom_call.1} parent=1 // pred_check
      _
    $region3: #{tpu_custom_call.1} parent=1 // pred_check_branch
      %17 = sbr.rel (0) target = $region5
    $region4: #{tpu_custom_call.1} parent=1 // pred_region
      %19 = vsyncadd [#allocation3], 0
      %s21 = sshll.u32 %s0, 4
      %s22 = int_to_ptr.hbm [resolvable:$true] %s21
      %s23 = sshll.u32 [#allocation2], 4
      %s24 = int_to_ptr.vmem [resolvable:$true] %s23
      %26 = dma.hbm_to_vmem [thread:$0]  %s22, 64, %s24, [#allocation3]
    $region5: #{tpu_custom_call.1} parent=1 // pred_fallthru
      _
    // Predicated region
    $region6: #{tpu_custom_call.1} parent=1 // pred_check
      _
    $region7: #{tpu_custom_call.1} parent=1 // pred_check_branch
      %28 = sbr.rel (0) target = $region9
    $region8: #{tpu_custom_call.1} parent=1 // pred_region
      %30 = vsyncadd [#allocation6], 0
      %s31 = sshll.u32 %s1, 4
      %s32 = int_to_ptr.hbm [resolvable:$true] %s31
      %s33 = sshll.u32 [#allocation5], 4
      %s34 = int_to_ptr.vmem [resolvable:$true] %s33
      %39 = dma.hbm_to_vmem [thread:$0]  %s32, 1536, %s34, [#allocation6], 192, 192, 12
    $region9: #{tpu_custom_call.1} parent=1 // pred_fallthru
      _
    // Predicated region
    $region10: #{tpu_custom_call.1} parent=1 // pred_check
      _
    $region11: #{tpu_custom_call.1} parent=1 // pred_check_branch
      %41 = sbr.rel (0) target = $region13
    $region12: #{tpu_custom_call.1} parent=1 // pred_region
      %43 = vsyncadd [#allocation6], 0
      %s45 = sshll.u32 %s2, 4
      %s46 = int_to_ptr.hbm [resolvable:$true] %s45
      %s47 = sshll.u32 [#allocation7], 4
      %s48 = int_to_ptr.vmem [resolvable:$true] %s47
      %50 = dma.hbm_to_vmem [thread:$0]  %s46, 48, %s48, [#allocation6]
    $region13: #{tpu_custom_call.1} parent=1 // pred_fallthru
      _
    // Predicated region
    $region14: #{tpu_custom_call.1} parent=1 // pred_check
      _
    $region15: #{tpu_custom_call.1} parent=1 // pred_check_branch
      %52 = sbr.rel (0) target = $region17
    $region16: #{tpu_custom_call.1} parent=1 // pred_region
      %54 = vsyncadd [#allocation9], 0
      %s55 = sshll.u32 %s3, 4
      %s56 = int_to_ptr.hbm [resolvable:$true] %s55
      %s57 = sshll.u32 [#allocation8], 4
      %s58 = int_to_ptr.vmem [resolvable:$true] %s57
      %63 = dma.hbm_to_vmem [thread:$0]  %s56, 6144, %s58, [#allocation9], 128, 128, 8
    $region17: #{tpu_custom_call.1} parent=1 // pred_fallthru
      _
    // Predicated region
    $region18: #{tpu_custom_call.1} parent=1 // pred_check
      _
    $region19: #{tpu_custom_call.1} parent=1 // pred_check_branch
      %65 = sbr.rel (0) target = $region21
    $region20: #{tpu_custom_call.1} parent=1 // pred_region
      _
    $region21: #{tpu_custom_call.1} parent=1 // pred_fallthru
      _
    // Predicated region
    $region22: #{tpu_custom_call.1} parent=1 // pred_check
      _
    $region23: #{tpu_custom_call.1} parent=1 // pred_check_branch
      %67 = sbr.rel (0) target = $region25
    $region24: #{tpu_custom_call.1} parent=1 // pred_region
      %69 = vsyncadd [#allocation9], 0
      %s70 = sshll.u32 %s5, 4
      %s71 = int_to_ptr.hbm [resolvable:$true] %s70
      %s72 = sshll.u32 [#allocation10], 4
      %s73 = int_to_ptr.vmem [resolvable:$true] %s72
      %78 = dma.hbm_to_vmem [thread:$0]  %s71, 4096, %s73, [#allocation9], 128, 128, 8
    $region25: #{tpu_custom_call.1} parent=1 // pred_fallthru
      _
    // Predicated region
    $region26: #{tpu_custom_call.1} parent=1 // pred_check
      _
    $region27: #{tpu_custom_call.1} parent=1 // pred_check_branch
      %80 = sbr.rel (0) target = $region29
    $region28: #{tpu_custom_call.1} parent=1 // pred_region
      _
    $region29: #{tpu_custom_call.1} parent=1 // pred_fallthru
      _
    // Predicated region
    $region30: #{tpu_custom_call.1} parent=1 // pred_check
      _
    $region31: #{tpu_custom_call.1} parent=1 // pred_check_branch
      %82 = sbr.rel (0) target = $region33
    $region32: #{tpu_custom_call.1} parent=1 // pred_region
      %84 = dma.done [#allocation3], 64
    $region33: #{tpu_custom_call.1} parent=1 // pred_fallthru
      _
    // Predicated region
    $region34: #{tpu_custom_call.1} parent=1 // pred_check
      _
    $region35: #{tpu_custom_call.1} parent=1 // pred_check_branch
      %86 = sbr.rel (0) target = $region37
    $region36: #{tpu_custom_call.1} parent=1 // pred_region
      %88 = dma.done [#allocation6], 1536
    $region37: #{tpu_custom_call.1} parent=1 // pred_fallthru
      _
    // Predicated region
    $region38: #{tpu_custom_call.1} parent=1 // pred_check
      _
    $region39: #{tpu_custom_call.1} parent=1 // pred_check_branch
      %90 = sbr.rel (0) target = $region41
    $region40: #{tpu_custom_call.1} parent=1 // pred_region
      %92 = dma.done [#allocation6], 48
    $region41: #{tpu_custom_call.1} parent=1 // pred_fallthru
      _
    // Predicated region
    $region42: #{tpu_custom_call.1} parent=1 // pred_check
      _
    $region43: #{tpu_custom_call.1} parent=1 // pred_check_branch
      %94 = sbr.rel (0) target = $region45
    $region44: #{tpu_custom_call.1} parent=1 // pred_region
      %96 = dma.done [#allocation9], 6144
    $region45: #{tpu_custom_call.1} parent=1 // pred_fallthru
      _
    // Predicated region
    $region46: #{tpu_custom_call.1} parent=1 // pred_check
      _
    $region47: #{tpu_custom_call.1} parent=1 // pred_check_branch
      %98 = sbr.rel (0) target = $region49
    $region48: #{tpu_custom_call.1} parent=1 // pred_region
      %100 = dma.done [#allocation9], 4096
    $region49: #{tpu_custom_call.1} parent=1 // pred_fallthru
      _
    %v102 = vld [vmem:[#allocation2] sm:$0xf]
    %v103 = vld [vmem:[#allocation5] sm:$0xff]
    %v104 = vld [vmem:[#allocation5 + $0x8] sm:$0xf]
    %v105 = vld [vmem:[#allocation5 + $0xc] sm:$0xff]
    %v106 = vld [vmem:[#allocation5 + $0x14] sm:$0xf]
    %v107 = vld [vmem:[#allocation5 + $0x18] sm:$0xff]
    %v108 = vld [vmem:[#allocation5 + $0x20] sm:$0xf]
    %v109 = vld [vmem:[#allocation5 + $0x24] sm:$0xff]
    %v110 = vld [vmem:[#allocation5 + $0x2c] sm:$0xf]
    %v111 = vld [vmem:[#allocation5 + $0x30] sm:$0xff]
    %v112 = vld [vmem:[#allocation5 + $0x38] sm:$0xf]
    %v113 = vld [vmem:[#allocation5 + $0x3c] sm:$0xff]
    %v114 = vld [vmem:[#allocation5 + $0x44] sm:$0xf]
    %v115 = vld [vmem:[#allocation5 + $0x48] sm:$0xff]
    %v116 = vld [vmem:[#allocation5 + $0x50] sm:$0xf]
    %v117 = vld [vmem:[#allocation5 + $0x54] sm:$0xff]
    %v118 = vld [vmem:[#allocation5 + $0x5c] sm:$0xf]
    %v119 = vld [vmem:[#allocation7] sm:$0x7]
    %v121 = vperm.slane %v119, 0
    %v122 = vperm.slane %v119, 1
    %v123 = vperm.slane %v119, 2
    %v143 = vunpack.c.l.b16 %v103
    %v144 = vunpack.c.h.b16 %v103
    %v145 = vunpack.c.l.b16 %v104
    %v146 = vunpack.c.l.b16 %v105
    %v147 = vunpack.c.h.b16 %v105
    %v148 = vunpack.c.l.b16 %v106
    %v149 = vunpack.c.l.b16 %v107
    %v150 = vunpack.c.h.b16 %v107
    %v151 = vunpack.c.l.b16 %v108
    %v152 = vunpack.c.l.b16 %v109
    %v153 = vunpack.c.h.b16 %v109
    %v154 = vunpack.c.l.b16 %v110
    %v155 = vunpack.c.l.b16 %v111
    %v156 = vunpack.c.h.b16 %v111
    %v157 = vunpack.c.l.b16 %v112
    %v158 = vunpack.c.l.b16 %v113
    %v159 = vunpack.c.h.b16 %v113
    %v160 = vunpack.c.l.b16 %v114
    %v161 = vunpack.c.l.b16 %v115
    %v162 = vunpack.c.h.b16 %v115
    %v163 = vunpack.c.l.b16 %v116
    %v164 = vunpack.c.l.b16 %v117
    %v165 = vunpack.c.h.b16 %v117
    %v166 = vunpack.c.l.b16 %v118
    %v167 = vpack.c.b16 %v146, %v143
    %v168 = vpack.c.b16 %v147, %v144
    %v169 = vpack.c.b16 %v148, %v145
    %v170 = vpack.c.b16 %v152, %v149
    %v171 = vpack.c.b16 %v153, %v150
    %v172 = vpack.c.b16 %v154, %v151
    %v173 = vpack.c.b16 %v158, %v155
    %v174 = vpack.c.b16 %v159, %v156
    %v175 = vpack.c.b16 %v160, %v157
    %v176 = vpack.c.b16 %v164, %v161
    %v177 = vpack.c.b16 %v165, %v162
    %v178 = vpack.c.b16 %v166, %v163
    %vm191 = vcmask 523264
    %v193 = vsel %vm191, %v102, 0
    %195 = vmatpush.bf16.msra.mxu0 0
    %196 = vmatpush.bf16.msra.mxu0 0
    %197 = vmatpush.bf16.msra.mxu0 0
    %198 = vmatpush.bf16.msra.mxu0 0
    %199 = vmatpush.bf16.msra.mxu0 %v176
    %200 = vmatpush.bf16.msra.mxu0 %v173
    %201 = vmatpush.bf16.msra.mxu0 %v170
    %202 = vmatpush.bf16.msra.mxu0 %v167
    %203 = vmatmul.bf16.gmra.mxu0 %v193
    %v204 = vpop.f32.mrf.mxu0
    %v205 = vadd.f32 %v121, %v204
    %v206 = vpop.f32.mrf.mxu0
    %207 = vdwg.mxu0
    %208 = vmatpush.bf16.msra.mxu0 0
    %209 = vmatpush.bf16.msra.mxu0 0
    %210 = vmatpush.bf16.msra.mxu0 0
    %211 = vmatpush.bf16.msra.mxu0 0
    %212 = vmatpush.bf16.msra.mxu0 %v177
    %213 = vmatpush.bf16.msra.mxu0 %v174
    %214 = vmatpush.bf16.msra.mxu0 %v171
    %215 = vmatpush.bf16.msra.mxu0 %v168
    %216 = vmatmul.bf16.gmra.mxu0 %v193
    %v217 = vpop.f32.mrf.mxu0
    %v218 = vadd.f32 %v122, %v217
    %v219 = vpop.f32.mrf.mxu0
    %220 = vdwg.mxu0
    %221 = vmatpush.bf16.msra.mxu0 0
    %222 = vmatpush.bf16.msra.mxu0 0
    %223 = vmatpush.bf16.msra.mxu0 0
    %224 = vmatpush.bf16.msra.mxu0 0
    %225 = vmatpush.bf16.msra.mxu0 %v178
    %226 = vmatpush.bf16.msra.mxu0 %v175
    %227 = vmatpush.bf16.msra.mxu0 %v172
    %228 = vmatpush.bf16.msra.mxu0 %v169
    %229 = vmatmul.bf16.gmra.mxu0 %v193
    %v230 = vpop.f32.mrf.mxu0
    %v231 = vadd.f32 %v123, %v230
    %v232 = vpop.f32.mrf.mxu0
    %233 = vdwg.mxu0
    %v234 = vpack.c.bf16 %v218, %v205
    %v235 = vpack.c.bf16 %v231, %v231
    %v236 = vunpack.c.l.bf16 %v234
    %v237 = vunpack.c.h.bf16 %v234
    %v238 = vunpack.c.l.bf16 %v235
    %v239 = vmul.f32 %v236, 0.5
    %v240 = vmul.f32 %v237, 0.5
    %v241 = vmul.f32 %v238, 0.5
    %v242 = vpack.c.bf16 %v240, %v239
    %v243 = vpack.c.bf16 %v241, %v241
    %v244 = vmul.f32 %v236, %v236
    %v245 = vmul.f32 %v237, %v237
    %v246 = vmul.f32 %v238, %v238
    %v247 = vpack.c.bf16 %v245, %v244
    %v248 = vpack.c.bf16 %v246, %v246
    %v249 = vunpack.c.l.bf16 %v247
    %v250 = vunpack.c.h.bf16 %v247
    %v251 = vunpack.c.l.bf16 %v248
    %v252 = vmul.f32 %v249, %v236
    %v253 = vmul.f32 %v250, %v237
    %v254 = vmul.f32 %v251, %v238
    %v255 = vpack.c.bf16 %v253, %v252
    %v256 = vpack.c.bf16 %v254, %v254
    %v257 = vunpack.c.l.bf16 %v255
    %v258 = vunpack.c.h.bf16 %v255
    %v259 = vunpack.c.l.bf16 %v256
    %v260 = vmul.f32 %v257, 0.044677734
    %v261 = vmul.f32 %v258, 0.044677734
    %v262 = vmul.f32 %v259, 0.044677734
    %v263 = vpack.c.bf16 %v261, %v260
    %v264 = vpack.c.bf16 %v262, %v262
    %v265 = vunpack.c.l.bf16 %v263
    %v266 = vunpack.c.h.bf16 %v263
    %v267 = vunpack.c.l.bf16 %v264
    %v268 = vadd.f32 %v236, %v265
    %v269 = vadd.f32 %v237, %v266
    %v270 = vadd.f32 %v238, %v267
    %v271 = vpack.c.bf16 %v269, %v268
    %v272 = vpack.c.bf16 %v270, %v270
    %v273 = vunpack.c.l.bf16 %v271
    %v274 = vunpack.c.h.bf16 %v271
    %v275 = vunpack.c.l.bf16 %v272
    %v276 = vmul.f32 %v273, 0.796875
    %v277 = vmul.f32 %v274, 0.796875
    %v278 = vmul.f32 %v275, 0.796875
    %v279 = vpack.c.bf16 %v277, %v276
    %v280 = vpack.c.bf16 %v278, %v278
    %v281 = vunpack.c.l.bf16 %v279
    %v282 = vunpack.c.h.bf16 %v279
    %v283 = vunpack.c.l.bf16 %v280
    %v284 = vtanh.pop %v281
    %v285 = vtanh.pop %v282
    %v286 = vtanh.pop %v283
    %v287 = vpack.c.bf16 %v285, %v284
    %v288 = vpack.c.bf16 %v286, %v286
    %v289 = vunpack.c.l.bf16 %v287
    %v290 = vunpack.c.h.bf16 %v287
    %v291 = vunpack.c.l.bf16 %v288
    %v292 = vadd.f32 %v289, 1.0
    %v293 = vadd.f32 %v290, 1.0
    %v294 = vadd.f32 %v291, 1.0
    %v295 = vpack.c.bf16 %v293, %v292
    %v296 = vpack.c.bf16 %v294, %v294
    %v297 = vunpack.c.l.bf16 %v242
    %v298 = vunpack.c.h.bf16 %v242
    %v299 = vunpack.c.l.bf16 %v243
    %v300 = vunpack.c.l.bf16 %v295
    %v301 = vunpack.c.h.bf16 %v295
    %v302 = vunpack.c.l.bf16 %v296
    %v303 = vmul.f32 %v297, %v300
    %v304 = vmul.f32 %v298, %v301
    %v305 = vmul.f32 %v299, %v302
    %v306 = vpack.c.bf16 %v303, %v303
    %v307 = vpack.c.bf16 %v304, %v304
    %v308 = vpack.c.bf16 %v305, %v305
    %v309 = vld [vmem:[#allocation8] sm:$0xff]
    %v310 = vld [vmem:[#allocation8 + $0x8] sm:$0xff]
    %v311 = vld [vmem:[#allocation8 + $0x10] sm:$0xff]
    %v312 = vld [vmem:[#allocation8 + $0x18] sm:$0xff]
    %v313 = vld [vmem:[#allocation8 + $0x20] sm:$0xff]
    %v314 = vld [vmem:[#allocation8 + $0x28] sm:$0xff]
    %v315 = vld [vmem:[#allocation8 + $0x30] sm:$0xff]
    %v316 = vld [vmem:[#allocation8 + $0x38] sm:$0xff]
    %v317 = vld [vmem:[#allocation8 + $0x40] sm:$0xff]
    %v318 = vld [vmem:[#allocation8 + $0x48] sm:$0xff]
    %v319 = vld [vmem:[#allocation8 + $0x50] sm:$0xff]
    %v320 = vld [vmem:[#allocation8 + $0x58] sm:$0xff]
    %v321 = vld [vmem:[#allocation8 + $0x60] sm:$0xff]
    %v322 = vld [vmem:[#allocation8 + $0x68] sm:$0xff]
    %v323 = vld [vmem:[#allocation8 + $0x70] sm:$0xff]
    %v324 = vld [vmem:[#allocation8 + $0x78] sm:$0xff]
    %v325 = vld [vmem:[#allocation8 + $0x80] sm:$0xff]
    %v326 = vld [vmem:[#allocation8 + $0x88] sm:$0xff]
    %v327 = vld [vmem:[#allocation8 + $0x90] sm:$0xff]
    %v328 = vld [vmem:[#allocation8 + $0x98] sm:$0xff]
    %v329 = vld [vmem:[#allocation8 + $0xa0] sm:$0xff]
    %v330 = vld [vmem:[#allocation8 + $0xa8] sm:$0xff]
    %v331 = vld [vmem:[#allocation8 + $0xb0] sm:$0xff]
    %v332 = vld [vmem:[#allocation8 + $0xb8] sm:$0xff]
    %v333 = vld [vmem:[#allocation8 + $0xc0] sm:$0xff]
    %v334 = vld [vmem:[#allocation8 + $0xc8] sm:$0xff]
    %v335 = vld [vmem:[#allocation8 + $0xd0] sm:$0xff]
    %v336 = vld [vmem:[#allocation8 + $0xd8] sm:$0xff]
    %v337 = vld [vmem:[#allocation8 + $0xe0] sm:$0xff]
    %v338 = vld [vmem:[#allocation8 + $0xe8] sm:$0xff]
    %v339 = vld [vmem:[#allocation8 + $0xf0] sm:$0xff]
    %v340 = vld [vmem:[#allocation8 + $0xf8] sm:$0xff]
    %v341 = vld [vmem:[#allocation8 + $0x100] sm:$0xff]
    %v342 = vld [vmem:[#allocation8 + $0x108] sm:$0xff]
    %v343 = vld [vmem:[#allocation8 + $0x110] sm:$0xff]
    %v344 = vld [vmem:[#allocation8 + $0x118] sm:$0xff]
    %v345 = vld [vmem:[#allocation8 + $0x120] sm:$0xff]
    %v346 = vld [vmem:[#allocation8 + $0x128] sm:$0xff]
    %v347 = vld [vmem:[#allocation8 + $0x130] sm:$0xff]
    %v348 = vld [vmem:[#allocation8 + $0x138] sm:$0xff]
    %v349 = vld [vmem:[#allocation8 + $0x140] sm:$0xff]
    %v350 = vld [vmem:[#allocation8 + $0x148] sm:$0xff]
    %v351 = vld [vmem:[#allocation8 + $0x150] sm:$0xff]
    %v352 = vld [vmem:[#allocation8 + $0x158] sm:$0xff]
    %v353 = vld [vmem:[#allocation8 + $0x160] sm:$0xff]
    %v354 = vld [vmem:[#allocation8 + $0x168] sm:$0xff]
    %v355 = vld [vmem:[#allocation8 + $0x170] sm:$0xff]
    %v356 = vld [vmem:[#allocation8 + $0x178] sm:$0xff]
    %v357 = vld [vmem:[%s4] sm:$0x3]
    %v359 = vperm.slane %v357, 0
    %v360 = vperm.slane %v357, 1
    %v411 = vunpack.c.l.b16 %v309
    %v412 = vunpack.c.h.b16 %v309
    %v413 = vunpack.c.l.b16 %v310
    %v414 = vunpack.c.h.b16 %v310
    %v415 = vunpack.c.l.b16 %v311
    %v416 = vunpack.c.h.b16 %v311
    %v417 = vunpack.c.l.b16 %v312
    %v418 = vunpack.c.h.b16 %v312
    %v419 = vunpack.c.l.b16 %v313
    %v420 = vunpack.c.h.b16 %v313
    %v421 = vunpack.c.l.b16 %v314
    %v422 = vunpack.c.h.b16 %v314
    %v423 = vunpack.c.l.b16 %v315
    %v424 = vunpack.c.h.b16 %v315
    %v425 = vunpack.c.l.b16 %v316
    %v426 = vunpack.c.h.b16 %v316
    %v427 = vunpack.c.l.b16 %v317
    %v428 = vunpack.c.h.b16 %v317
    %v429 = vunpack.c.l.b16 %v318
    %v430 = vunpack.c.h.b16 %v318
    %v431 = vunpack.c.l.b16 %v319
    %v432 = vunpack.c.h.b16 %v319
    %v433 = vunpack.c.l.b16 %v320
    %v434 = vunpack.c.h.b16 %v320
    %v435 = vunpack.c.l.b16 %v321
    %v436 = vunpack.c.h.b16 %v321
    %v437 = vunpack.c.l.b16 %v322
    %v438 = vunpack.c.h.b16 %v322
    %v439 = vunpack.c.l.b16 %v323
    %v440 = vunpack.c.h.b16 %v323
    %v441 = vunpack.c.l.b16 %v324
    %v442 = vunpack.c.h.b16 %v324
    %v443 = vunpack.c.l.b16 %v325
    %v444 = vunpack.c.h.b16 %v325
    %v445 = vunpack.c.l.b16 %v326
    %v446 = vunpack.c.h.b16 %v326
    %v447 = vunpack.c.l.b16 %v327
    %v448 = vunpack.c.h.b16 %v327
    %v449 = vunpack.c.l.b16 %v328
    %v450 = vunpack.c.h.b16 %v328
    %v451 = vunpack.c.l.b16 %v329
    %v452 = vunpack.c.h.b16 %v329
    %v453 = vunpack.c.l.b16 %v330
    %v454 = vunpack.c.h.b16 %v330
    %v455 = vunpack.c.l.b16 %v331
    %v456 = vunpack.c.h.b16 %v331
    %v457 = vunpack.c.l.b16 %v332
    %v458 = vunpack.c.h.b16 %v332
    %v459 = vunpack.c.l.b16 %v333
    %v460 = vunpack.c.h.b16 %v333
    %v461 = vunpack.c.l.b16 %v334
    %v462 = vunpack.c.h.b16 %v334
    %v463 = vunpack.c.l.b16 %v335
    %v464 = vunpack.c.h.b16 %v335
    %v465 = vunpack.c.l.b16 %v336
    %v466 = vunpack.c.h.b16 %v336
    %v467 = vunpack.c.l.b16 %v337
    %v468 = vunpack.c.h.b16 %v337
    %v469 = vunpack.c.l.b16 %v338
    %v470 = vunpack.c.h.b16 %v338
    %v471 = vunpack.c.l.b16 %v339
    %v472 = vunpack.c.h.b16 %v339
    %v473 = vunpack.c.l.b16 %v340
    %v474 = vunpack.c.h.b16 %v340
    %v475 = vunpack.c.l.b16 %v341
    %v476 = vunpack.c.h.b16 %v341
    %v477 = vunpack.c.l.b16 %v342
    %v478 = vunpack.c.h.b16 %v342
    %v479 = vunpack.c.l.b16 %v343
    %v480 = vunpack.c.h.b16 %v343
    %v481 = vunpack.c.l.b16 %v344
    %v482 = vunpack.c.h.b16 %v344
    %v483 = vunpack.c.l.b16 %v345
    %v484 = vunpack.c.h.b16 %v345
    %v485 = vunpack.c.l.b16 %v346
    %v486 = vunpack.c.h.b16 %v346
    %v487 = vunpack.c.l.b16 %v347
    %v488 = vunpack.c.h.b16 %v347
    %v489 = vunpack.c.l.b16 %v348
    %v490 = vunpack.c.h.b16 %v348
    %v491 = vunpack.c.l.b16 %v349
    %v492 = vunpack.c.h.b16 %v349
    %v493 = vunpack.c.l.b16 %v350
    %v494 = vunpack.c.h.b16 %v350
    %v495 = vunpack.c.l.b16 %v351
    %v496 = vunpack.c.h.b16 %v351
    %v497 = vunpack.c.l.b16 %v352
    %v498 = vunpack.c.h.b16 %v352
    %v499 = vunpack.c.l.b16 %v353
    %v500 = vunpack.c.h.b16 %v353
    %v501 = vunpack.c.l.b16 %v354
    %v502 = vunpack.c.h.b16 %v354
    %v503 = vunpack.c.l.b16 %v355
    %v504 = vunpack.c.h.b16 %v355
    %v505 = vunpack.c.l.b16 %v356
    %v506 = vunpack.c.h.b16 %v356
    %v507 = vpack.c.b16 %v413, %v411
    %v508 = vpack.c.b16 %v414, %v412
    %v509 = vpack.c.b16 %v417, %v415
    %v510 = vpack.c.b16 %v418, %v416
    %v511 = vpack.c.b16 %v421, %v419
    %v512 = vpack.c.b16 %v422, %v420
    %v513 = vpack.c.b16 %v425, %v423
    %v514 = vpack.c.b16 %v426, %v424
    %v515 = vpack.c.b16 %v429, %v427
    %v516 = vpack.c.b16 %v430, %v428
    %v517 = vpack.c.b16 %v433, %v431
    %v518 = vpack.c.b16 %v434, %v432
    %v519 = vpack.c.b16 %v437, %v435
    %v520 = vpack.c.b16 %v438, %v436
    %v521 = vpack.c.b16 %v441, %v439
    %v522 = vpack.c.b16 %v442, %v440
    %v523 = vpack.c.b16 %v445, %v443
    %v524 = vpack.c.b16 %v446, %v444
    %v525 = vpack.c.b16 %v449, %v447
    %v526 = vpack.c.b16 %v450, %v448
    %v527 = vpack.c.b16 %v453, %v451
    %v528 = vpack.c.b16 %v454, %v452
    %v529 = vpack.c.b16 %v457, %v455
    %v530 = vpack.c.b16 %v458, %v456
    %v531 = vpack.c.b16 %v461, %v459
    %v532 = vpack.c.b16 %v462, %v460
    %v533 = vpack.c.b16 %v465, %v463
    %v534 = vpack.c.b16 %v466, %v464
    %v535 = vpack.c.b16 %v469, %v467
    %v536 = vpack.c.b16 %v470, %v468
    %v537 = vpack.c.b16 %v473, %v471
    %v538 = vpack.c.b16 %v474, %v472
    %v539 = vpack.c.b16 %v477, %v475
    %v540 = vpack.c.b16 %v478, %v476
    %v541 = vpack.c.b16 %v481, %v479
    %v542 = vpack.c.b16 %v482, %v480
    %v543 = vpack.c.b16 %v485, %v483
    %v544 = vpack.c.b16 %v486, %v484
    %v545 = vpack.c.b16 %v489, %v487
    %v546 = vpack.c.b16 %v490, %v488
    %v547 = vpack.c.b16 %v493, %v491
    %v548 = vpack.c.b16 %v494, %v492
    %v549 = vpack.c.b16 %v497, %v495
    %v550 = vpack.c.b16 %v498, %v496
    %v551 = vpack.c.b16 %v501, %v499
    %v552 = vpack.c.b16 %v502, %v500
    %v553 = vpack.c.b16 %v505, %v503
    %v554 = vpack.c.b16 %v506, %v504
    %603 = vmatpush.bf16.msra.mxu0 %v521
    %604 = vmatpush.bf16.msra.mxu0 %v519
    %605 = vmatpush.bf16.msra.mxu0 %v517
    %606 = vmatpush.bf16.msra.mxu0 %v515
    %607 = vmatpush.bf16.msra.mxu0 %v513
    %608 = vmatpush.bf16.msra.mxu0 %v511
    %609 = vmatpush.bf16.msra.mxu0 %v509
    %610 = vmatpush.bf16.msra.mxu0 %v507
    %611 = vmatmul.bf16.gmra.mxu0 %v306
    %v612 = vpop.f32.mrf.mxu0
    %v613 = vadd.f32 %v359, %v612
    %v614 = vpop.f32.mrf.mxu0
    %615 = vdwg.mxu0
    %616 = vmatpush.bf16.msra.mxu0 %v537
    %617 = vmatpush.bf16.msra.mxu0 %v535
    %618 = vmatpush.bf16.msra.mxu0 %v533
    %619 = vmatpush.bf16.msra.mxu0 %v531
    %620 = vmatpush.bf16.msra.mxu0 %v529
    %621 = vmatpush.bf16.msra.mxu0 %v527
    %622 = vmatpush.bf16.msra.mxu0 %v525
    %623 = vmatpush.bf16.msra.mxu0 %v523
    %624 = vmatmul.bf16.gmra.mxu0 %v307
    %v625 = vpop.f32.mrf.mxu0
    %v626 = vadd.f32 %v613, %v625
    %v627 = vpop.f32.mrf.mxu0
    %628 = vdwg.mxu0
    %629 = vmatpush.bf16.msra.mxu0 %v553
    %630 = vmatpush.bf16.msra.mxu0 %v551
    %631 = vmatpush.bf16.msra.mxu0 %v549
    %632 = vmatpush.bf16.msra.mxu0 %v547
    %633 = vmatpush.bf16.msra.mxu0 %v545
    %634 = vmatpush.bf16.msra.mxu0 %v543
    %635 = vmatpush.bf16.msra.mxu0 %v541
    %636 = vmatpush.bf16.msra.mxu0 %v539
    %637 = vmatmul.bf16.gmra.mxu0 %v308
    %v638 = vpop.f32.mrf.mxu0
    %v639 = vadd.f32 %v626, %v638
    %v640 = vpop.f32.mrf.mxu0
    %641 = vdwg.mxu0
    %642 = vmatpush.bf16.msra.mxu0 %v522
    %643 = vmatpush.bf16.msra.mxu0 %v520
    %644 = vmatpush.bf16.msra.mxu0 %v518
    %645 = vmatpush.bf16.msra.mxu0 %v516
    %646 = vmatpush.bf16.msra.mxu0 %v514
    %647 = vmatpush.bf16.msra.mxu0 %v512
    %648 = vmatpush.bf16.msra.mxu0 %v510
    %649 = vmatpush.bf16.msra.mxu0 %v508
    %650 = vmatmul.bf16.gmra.mxu0 %v306
    %v651 = vpop.f32.mrf.mxu0
    %v652 = vadd.f32 %v360, %v651
    %v653 = vpop.f32.mrf.mxu0
    %654 = vdwg.mxu0
    %655 = vmatpush.bf16.msra.mxu0 %v538
    %656 = vmatpush.bf16.msra.mxu0 %v536
    %657 = vmatpush.bf16.msra.mxu0 %v534
    %658 = vmatpush.bf16.msra.mxu0 %v532
    %659 = vmatpush.bf16.msra.mxu0 %v530
    %660 = vmatpush.bf16.msra.mxu0 %v528
    %661 = vmatpush.bf16.msra.mxu0 %v526
    %662 = vmatpush.bf16.msra.mxu0 %v524
    %663 = vmatmul.bf16.gmra.mxu0 %v307
    %v664 = vpop.f32.mrf.mxu0
    %v665 = vadd.f32 %v652, %v664
    %v666 = vpop.f32.mrf.mxu0
    %667 = vdwg.mxu0
    %668 = vmatpush.bf16.msra.mxu0 %v554
    %669 = vmatpush.bf16.msra.mxu0 %v552
    %670 = vmatpush.bf16.msra.mxu0 %v550
    %671 = vmatpush.bf16.msra.mxu0 %v548
    %672 = vmatpush.bf16.msra.mxu0 %v546
    %673 = vmatpush.bf16.msra.mxu0 %v544
    %674 = vmatpush.bf16.msra.mxu0 %v542
    %675 = vmatpush.bf16.msra.mxu0 %v540
    %676 = vmatmul.bf16.gmra.mxu0 %v308
    %v677 = vpop.f32.mrf.mxu0
    %v678 = vadd.f32 %v665, %v677
    %v679 = vpop.f32.mrf.mxu0
    %680 = vdwg.mxu0
    %v681 = vpack.c.bf16 %v678, %v639
    %v682 = vunpack.c.l.bf16 %v681
    %v683 = vunpack.c.h.bf16 %v681
    %v684 = vmul.f32 %v682, 0.5
    %v685 = vmul.f32 %v683, 0.5
    %v686 = vpack.c.bf16 %v685, %v684
    %v687 = vmul.f32 %v682, %v682
    %v688 = vmul.f32 %v683, %v683
    %v689 = vpack.c.bf16 %v688, %v687
    %v690 = vunpack.c.l.bf16 %v689
    %v691 = vunpack.c.h.bf16 %v689
    %v692 = vmul.f32 %v690, %v682
    %v693 = vmul.f32 %v691, %v683
    %v694 = vpack.c.bf16 %v693, %v692
    %v695 = vunpack.c.l.bf16 %v694
    %v696 = vunpack.c.h.bf16 %v694
    %v697 = vmul.f32 %v695, 0.044677734
    %v698 = vmul.f32 %v696, 0.044677734
    %v699 = vpack.c.bf16 %v698, %v697
    %v700 = vunpack.c.l.bf16 %v699
    %v701 = vunpack.c.h.bf16 %v699
    %v702 = vadd.f32 %v682, %v700
    %v703 = vadd.f32 %v683, %v701
    %v704 = vpack.c.bf16 %v703, %v702
    %v705 = vunpack.c.l.bf16 %v704
    %v706 = vunpack.c.h.bf16 %v704
    %v707 = vmul.f32 %v705, 0.796875
    %v708 = vmul.f32 %v706, 0.796875
    %v709 = vpack.c.bf16 %v708, %v707
    %v710 = vunpack.c.l.bf16 %v709
    %v711 = vunpack.c.h.bf16 %v709
    %v712 = vtanh.pop %v710
    %v713 = vtanh.pop %v711
    %v714 = vpack.c.bf16 %v713, %v712
    %v715 = vunpack.c.l.bf16 %v714
    %v716 = vunpack.c.h.bf16 %v714
    %v717 = vadd.f32 %v715, 1.0
    %v718 = vadd.f32 %v716, 1.0
    %v719 = vpack.c.bf16 %v718, %v717
    %v720 = vunpack.c.l.bf16 %v686
    %v721 = vunpack.c.h.bf16 %v686
    %v722 = vunpack.c.l.bf16 %v719
    %v723 = vunpack.c.h.bf16 %v719
    %v724 = vmul.f32 %v720, %v722
    %v725 = vmul.f32 %v721, %v723
    %v726 = vpack.c.bf16 %v724, %v724
    %v727 = vpack.c.bf16 %v725, %v725
    %v728 = vld [vmem:[#allocation10] sm:$0xff]
    %v729 = vld [vmem:[#allocation10 + $0x8] sm:$0xff]
    %v730 = vld [vmem:[#allocation10 + $0x10] sm:$0xff]
    %v731 = vld [vmem:[#allocation10 + $0x18] sm:$0xff]
    %v732 = vld [vmem:[#allocation10 + $0x20] sm:$0xff]
    %v733 = vld [vmem:[#allocation10 + $0x28] sm:$0xff]
    %v734 = vld [vmem:[#allocation10 + $0x30] sm:$0xff]
    %v735 = vld [vmem:[#allocation10 + $0x38] sm:$0xff]
    %v736 = vld [vmem:[#allocation10 + $0x40] sm:$0xff]
    %v737 = vld [vmem:[#allocation10 + $0x48] sm:$0xff]
    %v738 = vld [vmem:[#allocation10 + $0x50] sm:$0xff]
    %v739 = vld [vmem:[#allocation10 + $0x58] sm:$0xff]
    %v740 = vld [vmem:[#allocation10 + $0x60] sm:$0xff]
    %v741 = vld [vmem:[#allocation10 + $0x68] sm:$0xff]
    %v742 = vld [vmem:[#allocation10 + $0x70] sm:$0xff]
    %v743 = vld [vmem:[#allocation10 + $0x78] sm:$0xff]
    %v744 = vld [vmem:[#allocation10 + $0x80] sm:$0xff]
    %v745 = vld [vmem:[#allocation10 + $0x88] sm:$0xff]
    %v746 = vld [vmem:[#allocation10 + $0x90] sm:$0xff]
    %v747 = vld [vmem:[#allocation10 + $0x98] sm:$0xff]
    %v748 = vld [vmem:[#allocation10 + $0xa0] sm:$0xff]
    %v749 = vld [vmem:[#allocation10 + $0xa8] sm:$0xff]
    %v750 = vld [vmem:[#allocation10 + $0xb0] sm:$0xff]
    %v751 = vld [vmem:[#allocation10 + $0xb8] sm:$0xff]
    %v752 = vld [vmem:[#allocation10 + $0xc0] sm:$0xff]
    %v753 = vld [vmem:[#allocation10 + $0xc8] sm:$0xff]
    %v754 = vld [vmem:[#allocation10 + $0xd0] sm:$0xff]
    %v755 = vld [vmem:[#allocation10 + $0xd8] sm:$0xff]
    %v756 = vld [vmem:[#allocation10 + $0xe0] sm:$0xff]
    %v757 = vld [vmem:[#allocation10 + $0xe8] sm:$0xff]
    %v758 = vld [vmem:[#allocation10 + $0xf0] sm:$0xff]
    %v759 = vld [vmem:[#allocation10 + $0xf8] sm:$0xff]
    %v760 = vld [vmem:[%s6] sm:$0x3]
    %v762 = vperm.slane %v760, 0
    %v763 = vperm.slane %v760, 1
    %v798 = vunpack.c.l.b16 %v728
    %v799 = vunpack.c.h.b16 %v728
    %v800 = vunpack.c.l.b16 %v729
    %v801 = vunpack.c.h.b16 %v729
    %v802 = vunpack.c.l.b16 %v730
    %v803 = vunpack.c.h.b16 %v730
    %v804 = vunpack.c.l.b16 %v731
    %v805 = vunpack.c.h.b16 %v731
    %v806 = vunpack.c.l.b16 %v732
    %v807 = vunpack.c.h.b16 %v732
    %v808 = vunpack.c.l.b16 %v733
    %v809 = vunpack.c.h.b16 %v733
    %v810 = vunpack.c.l.b16 %v734
    %v811 = vunpack.c.h.b16 %v734
    %v812 = vunpack.c.l.b16 %v735
    %v813 = vunpack.c.h.b16 %v735
    %v814 = vunpack.c.l.b16 %v736
    %v815 = vunpack.c.h.b16 %v736
    %v816 = vunpack.c.l.b16 %v737
    %v817 = vunpack.c.h.b16 %v737
    %v818 = vunpack.c.l.b16 %v738
    %v819 = vunpack.c.h.b16 %v738
    %v820 = vunpack.c.l.b16 %v739
    %v821 = vunpack.c.h.b16 %v739
    %v822 = vunpack.c.l.b16 %v740
    %v823 = vunpack.c.h.b16 %v740
    %v824 = vunpack.c.l.b16 %v741
    %v825 = vunpack.c.h.b16 %v741
    %v826 = vunpack.c.l.b16 %v742
    %v827 = vunpack.c.h.b16 %v742
    %v828 = vunpack.c.l.b16 %v743
    %v829 = vunpack.c.h.b16 %v743
    %v830 = vunpack.c.l.b16 %v744
    %v831 = vunpack.c.h.b16 %v744
    %v832 = vunpack.c.l.b16 %v745
    %v833 = vunpack.c.h.b16 %v745
    %v834 = vunpack.c.l.b16 %v746
    %v835 = vunpack.c.h.b16 %v746
    %v836 = vunpack.c.l.b16 %v747
    %v837 = vunpack.c.h.b16 %v747
    %v838 = vunpack.c.l.b16 %v748
    %v839 = vunpack.c.h.b16 %v748
    %v840 = vunpack.c.l.b16 %v749
    %v841 = vunpack.c.h.b16 %v749
    %v842 = vunpack.c.l.b16 %v750
    %v843 = vunpack.c.h.b16 %v750
    %v844 = vunpack.c.l.b16 %v751
    %v845 = vunpack.c.h.b16 %v751
    %v846 = vunpack.c.l.b16 %v752
    %v847 = vunpack.c.h.b16 %v752
    %v848 = vunpack.c.l.b16 %v753
    %v849 = vunpack.c.h.b16 %v753
    %v850 = vunpack.c.l.b16 %v754
    %v851 = vunpack.c.h.b16 %v754
    %v852 = vunpack.c.l.b16 %v755
    %v853 = vunpack.c.h.b16 %v755
    %v854 = vunpack.c.l.b16 %v756
    %v855 = vunpack.c.h.b16 %v756
    %v856 = vunpack.c.l.b16 %v757
    %v857 = vunpack.c.h.b16 %v757
    %v858 = vunpack.c.l.b16 %v758
    %v859 = vunpack.c.h.b16 %v758
    %v860 = vunpack.c.l.b16 %v759
    %v861 = vunpack.c.h.b16 %v759
    %v862 = vpack.c.b16 %v800, %v798
    %v863 = vpack.c.b16 %v801, %v799
    %v864 = vpack.c.b16 %v804, %v802
    %v865 = vpack.c.b16 %v805, %v803
    %v866 = vpack.c.b16 %v808, %v806
    %v867 = vpack.c.b16 %v809, %v807
    %v868 = vpack.c.b16 %v812, %v810
    %v869 = vpack.c.b16 %v813, %v811
    %v870 = vpack.c.b16 %v816, %v814
    %v871 = vpack.c.b16 %v817, %v815
    %v872 = vpack.c.b16 %v820, %v818
    %v873 = vpack.c.b16 %v821, %v819
    %v874 = vpack.c.b16 %v824, %v822
    %v875 = vpack.c.b16 %v825, %v823
    %v876 = vpack.c.b16 %v828, %v826
    %v877 = vpack.c.b16 %v829, %v827
    %v878 = vpack.c.b16 %v832, %v830
    %v879 = vpack.c.b16 %v833, %v831
    %v880 = vpack.c.b16 %v836, %v834
    %v881 = vpack.c.b16 %v837, %v835
    %v882 = vpack.c.b16 %v840, %v838
    %v883 = vpack.c.b16 %v841, %v839
    %v884 = vpack.c.b16 %v844, %v842
    %v885 = vpack.c.b16 %v845, %v843
    %v886 = vpack.c.b16 %v848, %v846
    %v887 = vpack.c.b16 %v849, %v847
    %v888 = vpack.c.b16 %v852, %v850
    %v889 = vpack.c.b16 %v853, %v851
    %v890 = vpack.c.b16 %v856, %v854
    %v891 = vpack.c.b16 %v857, %v855
    %v892 = vpack.c.b16 %v860, %v858
    %v893 = vpack.c.b16 %v861, %v859
    %926 = vmatpush.bf16.msra.mxu0 %v876
    %927 = vmatpush.bf16.msra.mxu0 %v874
    %928 = vmatpush.bf16.msra.mxu0 %v872
    %929 = vmatpush.bf16.msra.mxu0 %v870
    %930 = vmatpush.bf16.msra.mxu0 %v868
    %931 = vmatpush.bf16.msra.mxu0 %v866
    %932 = vmatpush.bf16.msra.mxu0 %v864
    %933 = vmatpush.bf16.msra.mxu0 %v862
    %934 = vmatmul.bf16.gmra.mxu0 %v726
    %v935 = vpop.f32.mrf.mxu0
    %v936 = vadd.f32 %v762, %v935
    %v937 = vpop.f32.mrf.mxu0
    %938 = vdwg.mxu0
    %939 = vmatpush.bf16.msra.mxu0 %v892
    %940 = vmatpush.bf16.msra.mxu0 %v890
    %941 = vmatpush.bf16.msra.mxu0 %v888
    %942 = vmatpush.bf16.msra.mxu0 %v886
    %943 = vmatpush.bf16.msra.mxu0 %v884
    %944 = vmatpush.bf16.msra.mxu0 %v882
    %945 = vmatpush.bf16.msra.mxu0 %v880
    %946 = vmatpush.bf16.msra.mxu0 %v878
    %947 = vmatmul.bf16.gmra.mxu0 %v727
    %v948 = vpop.f32.mrf.mxu0
    %v949 = vadd.f32 %v936, %v948
    %v950 = vpop.f32.mrf.mxu0
    %951 = vdwg.mxu0
    %952 = vmatpush.bf16.msra.mxu0 %v877
    %953 = vmatpush.bf16.msra.mxu0 %v875
    %954 = vmatpush.bf16.msra.mxu0 %v873
    %955 = vmatpush.bf16.msra.mxu0 %v871
    %956 = vmatpush.bf16.msra.mxu0 %v869
    %957 = vmatpush.bf16.msra.mxu0 %v867
    %958 = vmatpush.bf16.msra.mxu0 %v865
    %959 = vmatpush.bf16.msra.mxu0 %v863
    %960 = vmatmul.bf16.gmra.mxu0 %v726
    %v961 = vpop.f32.mrf.mxu0
    %v962 = vadd.f32 %v763, %v961
    %v963 = vpop.f32.mrf.mxu0
    %964 = vdwg.mxu0
    %965 = vmatpush.bf16.msra.mxu0 %v893
    %966 = vmatpush.bf16.msra.mxu0 %v891
    %967 = vmatpush.bf16.msra.mxu0 %v889
    %968 = vmatpush.bf16.msra.mxu0 %v887
    %969 = vmatpush.bf16.msra.mxu0 %v885
    %970 = vmatpush.bf16.msra.mxu0 %v883
    %971 = vmatpush.bf16.msra.mxu0 %v881
    %972 = vmatpush.bf16.msra.mxu0 %v879
    %973 = vmatmul.bf16.gmra.mxu0 %v727
    %v974 = vpop.f32.mrf.mxu0
    %v975 = vadd.f32 %v962, %v974
    %v976 = vpop.f32.mrf.mxu0
    %977 = vdwg.mxu0
    %v978 = vpack.c.bf16 %v975, %v949
    %979 = vst [vmem:[#allocation11] sm:$0xff] %v978
    // Predicated region
    $region50: #{tpu_custom_call.1} parent=1 // pred_check
      _
    $region51: #{tpu_custom_call.1} parent=1 // pred_check_branch
      %981 = sbr.rel (0) target = $region53
    $region52: #{tpu_custom_call.1} parent=1 // pred_region
      %983 = vsyncadd [#allocation4], 0
      %s985 = sshll.u32 [#allocation11], 4
      %s986 = int_to_ptr.vmem [resolvable:$true] %s985
      %s987 = sshll.u32 %s7, 4
      %s988 = int_to_ptr.hbm [resolvable:$true] %s987
      %990 = dma.vmem_to_hbm [thread:$0]  %s986, 128, %s988, [#allocation4]
    $region53: #{tpu_custom_call.1} parent=1 // pred_fallthru
      _
    // Predicated region
    $region54: #{tpu_custom_call.1} parent=1 // pred_check
      _
    $region55: #{tpu_custom_call.1} parent=1 // pred_check_branch
      %992 = sbr.rel (0) target = $region57
    $region56: #{tpu_custom_call.1} parent=1 // pred_region
      %994 = dma.done [#allocation4], 128
    $region57: #{tpu_custom_call.1} parent=1 // pred_fallthru
      _
    %995 = vsyncpa [#allocation3], 1
    %996 = vsyncpa [#allocation6], 1
    %997 = vsyncpa [#allocation9], 1
    %998 = vsyncpa [#allocation4], 1

</llo_original>
